<compile_context>
chip_gen: v7x
topology: tpu7x:2x2x1
jax: 0.10.0
libtpu: 0.0.40
codegen_flags: <defaults>
</compile_context>

<pallas_src>
import functools

import jax
import jax.numpy as jnp
from jax.experimental import pallas as pl
from jax.experimental.pallas import tpu as pltpu

_EPS = 1e-5
_LANE = 128          # TPU lane width: spatial tiles / chunks are lane-dense
_CHUNK = 2048        # phase-1 streaming chunk width (columns), multiple of 128


def _round_up(x, m):
    return (x + m - 1) // m * m


def _vmem_capacity_bytes():
    """Physical VMEM of the local TPU generation (64 MiB v7x, 128 MiB v5e/v6e)."""
    try:
        return int(pltpu.get_tpu_info().vmem_capacity_bytes)
    except Exception:
        return 64 * 1024 * 1024   # conservative (v7x-sized) fallback


def _plan_spatial(S, C, Cout, vmem_budget, max_tile_cols=None):
    """Pick (tS, n_tiles, chunk): tS is a multiple of 128 and chunk divides tS.

    Preference order:
      1. whole slab resident (n_tiles == 1) -> x is DMA'd from HBM exactly once per
         batch (phase 0 and phase 1 map to the same x block index).
      2. large lane-dense tiles sized from the VMEM budget (x read twice).
    """
    bytes_per_col = (2 * C + 2 * Cout) * 4            # double-buffered x + out tiles
    fit_cols = max(_LANE, (vmem_budget // bytes_per_col) // _LANE * _LANE)
    if max_tile_cols is not None:                     # test hook: force the tiled path
        fit_cols = min(fit_cols, max(_LANE, (max_tile_cols // _LANE) * _LANE))

    s128 = _round_up(S, _LANE)
    if s128 <= _CHUNK and s128 <= fit_cols:
        return s128, 1, s128                          # tiny volume: one tile, one chunk
    s_big = _round_up(S, _CHUNK)
    if s_big <= fit_cols:
        return s_big, 1, _CHUNK                       # whole slab resident: single read
    if fit_cols >= _CHUNK:
        tS = (fit_cols // _CHUNK) * _CHUNK
        chunk = _CHUNK
    else:
        tS = fit_cols
        chunk = fit_cols
    n_tiles = -(-S // tS)
    return tS, n_tiles, chunk


def _conv_fusion_kernel(x_ref, pp_ref, w3_ref, out_ref,
                        sum_ref, ssq_ref, scale_ref, shift_ref,
                        *, inv_spatial, chunk):
    """grid = (batch, phase, spatial tile); phase 0 = stats, phase 1 = emit."""
    phase = pl.program_id(1)
    s_idx = pl.program_id(2)

    # ---- phase 0: single-pass per-channel sum / sum-of-squares over x -----------
    @pl.when(phase == 0)
    def _():
        x = x_ref[0].astype(jnp.float32)              # (C, tS)

        @pl.when(s_idx == 0)
        def _():
            sum_ref[...] = jnp.zeros_like(sum_ref)
            ssq_ref[...] = jnp.zeros_like(ssq_ref)

        sum_ref[...] += jnp.sum(x, axis=-1, keepdims=True)
        ssq_ref[...] += jnp.sum(x * x, axis=-1, keepdims=True)

    # ---- phase 1: gated InstanceNorm + ReLU + 1x1x1 conv, streamed in chunks ----
    @pl.when(phase == 1)
    def _():
        # mu/var/scale/shift are identical for every spatial tile of a batch:
        # compute them once (first phase-1 tile) and reuse from scratch.
        @pl.when(s_idx == 0)
        def _():
            mu = sum_ref[...] * inv_spatial                       # (C, 1) mean of x
            # Single-pass biased variance E[x^2] - E[x]^2 (clamped for rounding).
            # TODO(synk): shifted / Welford accumulation if inputs may carry very
            # large means over very large S (catastrophic cancellation).
            var = jnp.maximum(ssq_ref[...] * inv_spatial - mu * mu, 0.0)
            gate2 = pp_ref[:, 0:1]                                # gate^2
            gg = pp_ref[:, 1:2]                                   # g2 * gate
            beta = pp_ref[:, 2:3]                                 # IN2 beta
            # x_se = gate*x  =>  mean(x_se) = gate*mu, var(x_se) = gate^2*var.
            # Fold into one per-channel affine: h2 = relu(scale*x + shift).
            scale = gg * jax.lax.rsqrt(gate2 * var + _EPS)        # (C, 1)
            scale_ref[...] = scale
            shift_ref[...] = beta - scale * mu

        scale = scale_ref[...]
        shift = shift_ref[...]
        w3 = w3_ref[...]                                          # (Cout, C) f32

        tS = x_ref.shape[2]
        n_chunks = tS // chunk

        def emit(off):
            xc = x_ref[0, :, pl.ds(off, chunk)].astype(jnp.float32)
            h2 = jnp.maximum(scale * xc + shift, 0.0)
            # f32 MXU dot (K=16, M=Cout): fully hidden under the HBM DMA, so there
            # is no reason to pay a bf16 per-element error here.
            y = jnp.dot(w3, h2, preferred_element_type=jnp.float32)
            out_ref[0, :, pl.ds(off, chunk)] = y.astype(out_ref.dtype)

        if n_chunks == 1:
            emit(0)
        else:
            def body(i, carry):
                emit(pl.multiple_of(i * chunk, chunk))
                return carry
            jax.lax.fori_loop(0, n_chunks, body, 0, unroll=(n_chunks <= 8))


def prepare_params(w1, g1, b1, w2, b2, g2, bt2, w3):
    """Fold the SE branch into a per-channel gate and pack per-channel params.

    InstanceNorm3d applied to the 1x1x1 output of AdaptiveMaxPool3d(1) is exactly
    zero (mean == value, var == 0), so the pooled value, w1 and g1 are
    mathematically dead and gate = sigmoid(w2 @ relu(b1) + b2) is a constant.
    """
    del w1, g1  # dead by construction: they only multiply a tensor that is exactly 0
    h1 = jnp.maximum(b1, 0.0)                                               # (C4,)
    gate = jax.nn.sigmoid(
        jnp.dot(w2, h1, precision=jax.lax.Precision.HIGHEST) + b2)          # (C,)
    pp = jnp.stack([gate * gate, g2 * gate, bt2], axis=-1)                  # (C, 3)
    # w3 stays f32: the final dot is invisible next to the HBM DMA (review item).
    return {"pp": pp.astype(jnp.float32), "w3": w3.astype(jnp.float32)}


def conv_fusion(x, params, *, max_tile_cols=None):
    """x: (N, C, D, H, W) (PyTorch NCDHW). Returns (N, C//k, D, H, W) in x.dtype.

    max_tile_cols: optional cap on the spatial tile width (testing hook used to
    force the multi-tile fallback path on small inputs).
    """
    N, C, D, H, W = x.shape
    S = D * H * W
    Cout = params["w3"].shape[0]

    vmem_cap = _vmem_capacity_bytes()
    vmem_budget = int(0.75 * vmem_cap)            # headroom for Mosaic internal scratch
    tS, n_tiles, chunk = _plan_spatial(S, C, Cout, vmem_budget, max_tile_cols)
    S_pad = tS * n_tiles

    xf = x.reshape(N, C, S)
    if S_pad != S:
        # Zero padding does not perturb sum/ssq and inv_spatial uses the true S, so
        # the InstanceNorm statistics stay exact; padded columns are sliced off below.
        xf = jnp.pad(xf, ((0, 0), (0, 0), (0, S_pad - S)))

    elem = jnp.dtype(x.dtype).itemsize
    need = (2 * C * elem + 2 * Cout * 4) * tS     # double-buffered x / out tiles
    need += (C * 3 + Cout * C) * 4 * 2            # packed params + w3 (double-buffered)
    need += C * 6 * 4                             # sum / ssq / scale / shift scratch
    need += (3 * C + 2 * Cout) * chunk * 4        # phase-1 live chunk temporaries
    vmem_limit = int(min(max(need + (4 << 20), 32 << 20), int(0.9 * vmem_cap)))

    # out_specs index trick: during phase 0 the output window is parked on tile 0
    # (never written there); phase 1 writes tile s, so every output block is written
    # exactly once before its block index changes (which is what triggers writeback)
    # and no garbage ever reaches HBM.  This relies on Pallas's writeback-on-index-
    # change semantics and the (N, phase, s) grid order; the forced-tiling check in
    # __main__ exercises exactly this path on hardware.
    out = pl.pallas_call(
        functools.partial(_conv_fusion_kernel, inv_spatial=1.0 / S, chunk=chunk),
        out_shape=jax.ShapeDtypeStruct((N, Cout, S_pad), x.dtype),
        grid_spec=pltpu.PrefetchScalarGridSpec(
            num_scalar_prefetch=0,
            grid=(N, 2, n_tiles),                 # (batch, phase, spatial tile)
            in_specs=[
                # x's index_map ignores the phase axis, so when n_tiles == 1 the
                # block index is unchanged between phase 0 and phase 1 and Pallas
                # skips the second DMA: x is read from HBM exactly once per batch.
                pl.BlockSpec((1, C, tS), lambda n, p, s: (n, 0, s)),     # x tile
                pl.BlockSpec((C, 3), lambda n, p, s: (0, 0)),            # packed params
                pl.BlockSpec((Cout, C), lambda n, p, s: (0, 0)),         # w3 (f32)
            ],
            out_specs=pl.BlockSpec((1, Cout, tS), lambda n, p, s: (n, 0, s * p)),
            scratch_shapes=[pltpu.VMEM((C, 1), jnp.float32),             # sum(x)
                            pltpu.VMEM((C, 1), jnp.float32),             # sum(x*x)
                            pltpu.VMEM((C, 1), jnp.float32),             # scale
                            pltpu.VMEM((C, 1), jnp.float32)],            # shift
        ),
        # TODO(synk): for N == 1 on v7x (2 TensorCores), split into a stats pass and
        # a spatially-parallel emit pass so both cores have work; with the shared
        # sum/ssq scratch the spatial axis cannot simply be marked "parallel".
        compiler_params=pltpu.CompilerParams(
            dimension_semantics=("parallel", "arbitrary", "arbitrary"),
            vmem_limit_bytes=vmem_limit),
    )(xf, params["pp"], params["w3"])

    if S_pad != S:
        out = out[:, :, :S]
    return out.reshape(N, Cout, D, H, W)


def conv_fusion_ref(x, w1, g1, b1, w2, b2, g2, bt2, w3, eps=_EPS):
    """Pure-JAX f32 reference of the PyTorch forward (for correctness check)."""
    N, C, D, H, W = x.shape
    xf = x.reshape(N, C, -1)
    m = jnp.max(xf, axis=-1)                                             # AdaptiveMaxPool3d(1)
    y1 = jnp.einsum("jc,nc->nj", w1, m,
                    precision=jax.lax.Precision.HIGHEST)                 # Conv3d C -> C/4
    y1_hat = (y1 - y1) / jnp.sqrt(0.0 + eps)                             # IN3d over 1x1x1 == 0
    h1 = jnp.maximum(g1 * y1_hat + b1, 0.0)
    y2 = jnp.einsum("cj,nj->nc", w2, h1,
                    precision=jax.lax.Precision.HIGHEST) + b2            # Conv3d C/4 -> C
    gate = jax.nn.sigmoid(y2)
    x_se = gate[:, :, None] * xf
    mu = jnp.mean(x_se, axis=-1, keepdims=True)
    var = jnp.mean((x_se - mu) ** 2, axis=-1, keepdims=True)
    x_hat = (x_se - mu) / jnp.sqrt(var + eps)
    h2 = jnp.maximum(g2[None, :, None] * x_hat + bt2[None, :, None], 0.0)
    out = jnp.einsum("oc,ncs->nos", w3, h2,
                     precision=jax.lax.Precision.HIGHEST)
    return out.reshape(N, w3.shape[0], D, H, W)


if __name__ == "__main__":
    N, C, D, H, W = 2, 16, 4, 8, 8
    k = 3
    C4, Cout = C // 4, C // k

    key = jax.random.PRNGKey(0)
    keys = jax.random.split(key, 10)

    x = jax.random.normal(keys[0], (N, C, D, H, W), jnp.float32)

    # Conv3d weights: kaiming_normal_(mode='fan_out', relu) -> std = sqrt(2 / fan_out)
    w1 = jax.random.normal(keys[1], (C4, C), jnp.float32) * jnp.sqrt(2.0 / C4)
    w2 = jax.random.normal(keys[2], (C, C4), jnp.float32) * jnp.sqrt(2.0 / C)
    w3 = jax.random.normal(keys[3], (Cout, C), jnp.float32) * jnp.sqrt(2.0 / Cout)
    b2 = jnp.zeros((C,), jnp.float32)  # _weights_init zeroes conv biases

    # InstanceNorm affine params (PyTorch default weight=1, bias=0; use non-trivial
    # deterministic values so every branch is numerically exercised).
    g1 = 1.0 + 0.1 * jax.random.normal(keys[4], (C4,), jnp.float32)
    b1 = 0.1 * jax.random.normal(keys[5], (C4,), jnp.float32)
    g2 = 1.0 + 0.1 * jax.random.normal(keys[6], (C,), jnp.float32)
    bt2 = 0.1 * jax.random.normal(keys[7], (C,), jnp.float32)

    params = prepare_params(w1, g1, b1, w2, b2, g2, bt2, w3)

    def check(out, ref, tag):
        assert out.shape == ref.shape, (tag, out.shape, ref.shape)
        err = jnp.abs(out - ref)
        max_err = float(jnp.max(err))
        rel_rms = float(jnp.sqrt(jnp.mean(err ** 2) / jnp.mean(ref ** 2)))
        # Conservative tolerances (single-pass variance + MXU matmul passes).
        assert max_err < 5e-2, f"{tag}: max_err={max_err}"
        assert rel_rms < 8e-3, f"{tag}: rel_rms={rel_rms}"

    ref = conv_fusion_ref(x, w1, g1, b1, w2, b2, g2, bt2, w3)

    # 1) Default path: whole spatial slab resident, x read from HBM once per batch.
    out = jax.block_until_ready(conv_fusion(x, params))
    check(out, ref, "resident")

    # 2) Forced multi-tile fallback: exercises the parked-output-block writeback
    #    path and the two-phase (double-read) tiling on real hardware.
    out_tiled = jax.block_until_ready(conv_fusion(x, params, max_tile_cols=128))
    check(out_tiled, ref, "tiled")

    # 3) Awkward D*H*W (S not a multiple of 128) -> wrapper zero-padding path.
    D2, H2, W2 = 3, 5, 7
    x2 = jax.random.normal(keys[8], (N, C, D2, H2, W2), jnp.float32)
    ref2 = conv_fusion_ref(x2, w1, g1, b1, w2, b2, g2, bt2, w3)
    out2 = jax.block_until_ready(conv_fusion(x2, params))
    check(out2, ref2, "padded")

    # 4) Larger volume (S = 4096): resident single tile, phase-1 chunk loop (2x2048).
    D3, H3, W3 = 4, 32, 32
    x3 = jax.random.normal(keys[9], (N, C, D3, H3, W3), jnp.float32)
    ref3 = conv_fusion_ref(x3, w1, g1, b1, w2, b2, g2, bt2, w3)
    out3 = jax.block_until_ready(conv_fusion(x3, params))
    check(out3, ref3, "chunked")

    print("KERNEL_OK")
</pallas_src>

<mosaic_0001>
module attributes {stable_mosaic.version = 11 : i64} {
  func.func @_conv_fusion_kernel(%arg0: i32, %arg1: i32, %arg2: i32, %arg3: memref<1x16x256xf32, #tpu.memory_space<vmem>>, %arg4: memref<16x3xf32, #tpu.memory_space<vmem>>, %arg5: memref<5x16xf32, #tpu.memory_space<vmem>>, %arg6: memref<1x5x256xf32, #tpu.memory_space<vmem>>, %arg7: memref<16x1xf32, #tpu.memory_space<vmem>>, %arg8: memref<16x1xf32, #tpu.memory_space<vmem>>, %arg9: memref<16x1xf32, #tpu.memory_space<vmem>>, %arg10: memref<16x1xf32, #tpu.memory_space<vmem>>) attributes {dimension_semantics = [#tpu.dimension_semantics<parallel>, #tpu.dimension_semantics<arbitrary>, #tpu.dimension_semantics<arbitrary>], iteration_bounds = array<i64: 2, 2, 1>, scalar_prefetch = 0 : i64, scratch_operands = 4 : i64, tpu.core_type = #tpu.core_type<tc>, window_params = [{transform_indices = @transform_0, window_bounds = array<i64: 1, 16, 256>}, {pipeline_mode = #tpu.pipeline_mode<synchronous>, transform_indices = @transform_1, window_bounds = array<i64: 16, 3>}, {pipeline_mode = #tpu.pipeline_mode<synchronous>, transform_indices = @transform_2, window_bounds = array<i64: 5, 16>}, {transform_indices = @transform_3, window_bounds = array<i64: 1, 5, 256>}]} {
    %c0_i32 = arith.constant 0 : i32
    %0 = arith.cmpi eq, %arg1, %c0_i32 : i32
    %1 = arith.extui %0 : i1 to i32
    %c0_i32_0 = arith.constant 0 : i32
    %2 = arith.cmpi ne, %1, %c0_i32_0 : i32
    scf.if %2 {
      %c0 = arith.constant 0 : index
      %c0_2 = arith.constant 0 : index
      %c0_3 = arith.constant 0 : index
      %6 = vector.load %arg3[%c0, %c0_2, %c0_3] : memref<1x16x256xf32, #tpu.memory_space<vmem>>, vector<1x16x256xf32>
      %7 = vector.shape_cast %6 : vector<1x16x256xf32> to vector<16x256xf32>
      %c0_i32_4 = arith.constant 0 : i32
      %8 = arith.cmpi eq, %arg2, %c0_i32_4 : i32
      %9 = arith.extui %8 : i1 to i32
      %c0_i32_5 = arith.constant 0 : i32
      %10 = arith.cmpi ne, %9, %c0_i32_5 : i32
      scf.if %10 {
        %cst_15 = arith.constant 0.000000e+00 : f32
        %22 = vector.broadcast %cst_15 : f32 to vector<16x1xf32>
        %c0_16 = arith.constant 0 : index
        %c0_17 = arith.constant 0 : index
        %23 = vector.load %arg7[%c0_16, %c0_17] : memref<16x1xf32, #tpu.memory_space<vmem>>, vector<16x1xf32>
        tpu.vector_store %arg7[%c0_16, %c0_17], %22 {strides = array<i32>} : memref<16x1xf32, #tpu.memory_space<vmem>>, vector<16x1xf32>,
        %cst_18 = arith.constant 0.000000e+00 : f32
        %24 = vector.broadcast %cst_18 : f32 to vector<16x1xf32>
        %c0_19 = arith.constant 0 : index
        %c0_20 = arith.constant 0 : index
        %25 = vector.load %arg8[%c0_19, %c0_20] : memref<16x1xf32, #tpu.memory_space<vmem>>, vector<16x1xf32>
        tpu.vector_store %arg8[%c0_19, %c0_20], %24 {strides = array<i32>} : memref<16x1xf32, #tpu.memory_space<vmem>>, vector<16x1xf32>,
      } else {
      }
      %c0_6 = arith.constant 0 : index
      %c0_7 = arith.constant 0 : index
      %11 = vector.load %arg7[%c0_6, %c0_7] : memref<16x1xf32, #tpu.memory_space<vmem>>, vector<16x1xf32>
      %cst = arith.constant dense<0.000000e+00> : vector<16xf32>
      %12 = vector.multi_reduction <add>, %7, %cst [1] : vector<16x256xf32> to vector<16xf32>
      %13 = vector.shape_cast %12 : vector<16xf32> to vector<16x1xf32>
      %14 = arith.addf %11, %13 : vector<16x1xf32>
      %c0_8 = arith.constant 0 : index
      %c0_9 = arith.constant 0 : index
      %15 = vector.load %arg7[%c0_8, %c0_9] : memref<16x1xf32, #tpu.memory_space<vmem>>, vector<16x1xf32>
      tpu.vector_store %arg7[%c0_8, %c0_9], %14 {strides = array<i32>} : memref<16x1xf32, #tpu.memory_space<vmem>>, vector<16x1xf32>,
      %c0_10 = arith.constant 0 : index
      %c0_11 = arith.constant 0 : index
      %16 = vector.load %arg8[%c0_10, %c0_11] : memref<16x1xf32, #tpu.memory_space<vmem>>, vector<16x1xf32>
      %17 = arith.mulf %7, %7 : vector<16x256xf32>
      %cst_12 = arith.constant dense<0.000000e+00> : vector<16xf32>
      %18 = vector.multi_reduction <add>, %17, %cst_12 [1] : vector<16x256xf32> to vector<16xf32>
      %19 = vector.shape_cast %18 : vector<16xf32> to vector<16x1xf32>
      %20 = arith.addf %16, %19 : vector<16x1xf32>
      %c0_13 = arith.constant 0 : index
      %c0_14 = arith.constant 0 : index
      %21 = vector.load %arg8[%c0_13, %c0_14] : memref<16x1xf32, #tpu.memory_space<vmem>>, vector<16x1xf32>
      tpu.vector_store %arg8[%c0_13, %c0_14], %20 {strides = array<i32>} : memref<16x1xf32, #tpu.memory_space<vmem>>, vector<16x1xf32>,
    } else {
    }
    %c1_i32 = arith.constant 1 : i32
    %3 = arith.cmpi eq, %arg1, %c1_i32 : i32
    %4 = arith.extui %3 : i1 to i32
    %c0_i32_1 = arith.constant 0 : i32
    %5 = arith.cmpi ne, %4, %c0_i32_1 : i32
    scf.if %5 {
      %c0_i32_2 = arith.constant 0 : i32
      %6 = arith.cmpi eq, %arg2, %c0_i32_2 : i32
      %7 = arith.extui %6 : i1 to i32
      %c0_i32_3 = arith.constant 0 : i32
      %8 = arith.cmpi ne, %7, %c0_i32_3 : i32
      scf.if %8 {
        %c0_16 = arith.constant 0 : index
        %c0_17 = arith.constant 0 : index
        %24 = vector.load %arg7[%c0_16, %c0_17] : memref<16x1xf32, #tpu.memory_space<vmem>>, vector<16x1xf32>
        %cst_18 = arith.constant 3.906250e-03 : f32
        %25 = vector.broadcast %cst_18 : f32 to vector<16x1xf32>
        %26 = arith.mulf %24, %25 : vector<16x1xf32>
        %c0_19 = arith.constant 0 : index
        %c0_20 = arith.constant 0 : index
        %27 = vector.load %arg8[%c0_19, %c0_20] : memref<16x1xf32, #tpu.memory_space<vmem>>, vector<16x1xf32>
        %cst_21 = arith.constant 3.906250e-03 : f32
        %28 = vector.broadcast %cst_21 : f32 to vector<16x1xf32>
        %29 = arith.mulf %27, %28 : vector<16x1xf32>
        %30 = arith.mulf %26, %26 : vector<16x1xf32>
        %31 = arith.subf %29, %30 : vector<16x1xf32>
        %cst_22 = arith.constant 0.000000e+00 : f32
        %32 = vector.broadcast %cst_22 : f32 to vector<16x1xf32>
        %33 = arith.maximumf %31, %32 : vector<16x1xf32>
        %c0_23 = arith.constant 0 : index
        %c0_24 = arith.constant 0 : index
        %34 = vector.load %arg4[%c0_23, %c0_24] : memref<16x3xf32, #tpu.memory_space<vmem>>, vector<16x1xf32>
        %c0_25 = arith.constant 0 : index
        %c1 = arith.constant 1 : index
        %35 = vector.load %arg4[%c0_25, %c1] : memref<16x3xf32, #tpu.memory_space<vmem>>, vector<16x1xf32>
        %c0_26 = arith.constant 0 : index
        %c2 = arith.constant 2 : index
        %36 = vector.load %arg4[%c0_26, %c2] : memref<16x3xf32, #tpu.memory_space<vmem>>, vector<16x1xf32>
        %37 = arith.mulf %34, %33 : vector<16x1xf32>
        %cst_27 = arith.constant 9.99999974E-6 : f32
        %38 = vector.broadcast %cst_27 : f32 to vector<16x1xf32>
        %39 = arith.addf %37, %38 : vector<16x1xf32>
        %40 = math.rsqrt %39 : vector<16x1xf32>
        %41 = arith.mulf %35, %40 : vector<16x1xf32>
        %c0_28 = arith.constant 0 : index
        %c0_29 = arith.constant 0 : index
        %42 = vector.load %arg9[%c0_28, %c0_29] : memref<16x1xf32, #tpu.memory_space<vmem>>, vector<16x1xf32>
        tpu.vector_store %arg9[%c0_28, %c0_29], %41 {strides = array<i32>} : memref<16x1xf32, #tpu.memory_space<vmem>>, vector<16x1xf32>,
        %43 = arith.mulf %41, %26 : vector<16x1xf32>
        %44 = arith.subf %36, %43 : vector<16x1xf32>
        %c0_30 = arith.constant 0 : index
        %c0_31 = arith.constant 0 : index
        %45 = vector.load %arg10[%c0_30, %c0_31] : memref<16x1xf32, #tpu.memory_space<vmem>>, vector<16x1xf32>
        tpu.vector_store %arg10[%c0_30, %c0_31], %44 {strides = array<i32>} : memref<16x1xf32, #tpu.memory_space<vmem>>, vector<16x1xf32>,
      } else {
      }
      %c0 = arith.constant 0 : index
      %c0_4 = arith.constant 0 : index
      %9 = vector.load %arg9[%c0, %c0_4] : memref<16x1xf32, #tpu.memory_space<vmem>>, vector<16x1xf32>
      %c0_5 = arith.constant 0 : index
      %c0_6 = arith.constant 0 : index
      %10 = vector.load %arg10[%c0_5, %c0_6] : memref<16x1xf32, #tpu.memory_space<vmem>>, vector<16x1xf32>
      %c0_7 = arith.constant 0 : index
      %c0_8 = arith.constant 0 : index
      %11 = vector.load %arg5[%c0_7, %c0_8] : memref<5x16xf32, #tpu.memory_space<vmem>>, vector<5x16xf32>
      %c0_9 = arith.constant 0 : index
      %c0_10 = arith.constant 0 : index
      %c0_11 = arith.constant 0 : index
      %12 = vector.load %arg3[%c0_9, %c0_10, %c0_11] : memref<1x16x256xf32, #tpu.memory_space<vmem>>, vector<1x16x256xf32>
      %13 = vector.shape_cast %12 : vector<1x16x256xf32> to vector<16x256xf32>
      %14 = vector.broadcast %9 : vector<16x1xf32> to vector<16x256xf32>
      %15 = arith.mulf %14, %13 : vector<16x256xf32>
      %16 = vector.broadcast %10 : vector<16x1xf32> to vector<16x256xf32>
      %17 = arith.addf %15, %16 : vector<16x256xf32>
      %cst = arith.constant 0.000000e+00 : f32
      %18 = vector.broadcast %cst : f32 to vector<16x256xf32>
      %19 = arith.maximumf %17, %18 : vector<16x256xf32>
      %cst_12 = arith.constant dense<0.000000e+00> : vector<5x256xf32>
      %20 = tpu.matmul %11, %19, %cst_12 {dimension_numbers = #tpu.dot_dimension_numbers<[1], [0], [0], [1], [0, 0, 1, 1], [], []>} : vector<5x16xf32>, vector<16x256xf32>, vector<5x256xf32> -> vector<5x256xf32>
      %c0_13 = arith.constant 0 : index
      %c0_14 = arith.constant 0 : index
      %c0_15 = arith.constant 0 : index
      %21 = vector.load %arg6[%c0_13, %c0_14, %c0_15] : memref<1x5x256xf32, #tpu.memory_space<vmem>>, vector<1x5x256xf32>
      %22 = vector.shape_cast %21 : vector<1x5x256xf32> to vector<5x256xf32>
      %23 = vector.shape_cast %20 : vector<5x256xf32> to vector<1x5x256xf32>
      tpu.vector_store %arg6[%c0_13, %c0_14, %c0_15], %23 {strides = array<i32>} : memref<1x5x256xf32, #tpu.memory_space<vmem>>, vector<1x5x256xf32>,
    } else {
    }
    return
  }
  func.func @transform_0(%arg0: i32, %arg1: i32, %arg2: i32) -> (i32, i32, i32) {
    %c0_i32 = arith.constant 0 : i32
    %c0_i32_0 = arith.constant 0 : i32
    return %arg0, %c0_i32, %arg2 : i32, i32, i32
  }
  func.func @transform_1(%arg0: i32, %arg1: i32, %arg2: i32) -> (i32, i32) {
    %c0_i32 = arith.constant 0 : i32
    %c0_i32_0 = arith.constant 0 : i32
    %c0_i32_1 = arith.constant 0 : i32
    return %c0_i32, %c0_i32_0 : i32, i32
  }
  func.func @transform_2(%arg0: i32, %arg1: i32, %arg2: i32) -> (i32, i32) {
    %c0_i32 = arith.constant 0 : i32
    %c0_i32_0 = arith.constant 0 : i32
    %c0_i32_1 = arith.constant 0 : i32
    return %c0_i32, %c0_i32_0 : i32, i32
  }
  func.func @transform_3(%arg0: i32, %arg1: i32, %arg2: i32) -> (i32, i32, i32) {
    %0 = arith.muli %arg2, %arg1 : i32
    %c0_i32 = arith.constant 0 : i32
    %c0_i32_0 = arith.constant 0 : i32
    return %arg0, %c0_i32, %0 : i32, i32, i32
  }
}

</mosaic_0001>

<llo_original>
// kernel: tpu_custom_call.1
$region0: #{tpu_custom_call.1}
  #allocation0 [shape = 'u32[]', space=smem, size = 0x4, offset = 0x4, fixed_abs, tag = 'smem constant byte address 0x4 - core index']
  #allocation1 [shape = 'u32[144,128]{1,0:T(1,128)}', space=vmem, size = 0x12000, scoped, tag = 'internal scratch']
  #allocation2 [shape = 'f32[16,1]{1,0:T(8,128)}', space=vmem, size = 0x2000, scoped, tag = 'scratch operand']
  #allocation3 [shape = 'f32[16,1]{1,0:T(8,128)}', space=vmem, size = 0x2000, scoped, tag = 'scratch operand']
  #allocation4 [shape = 'f32[16,1]{1,0:T(8,128)}', space=vmem, size = 0x2000, scoped, tag = 'scratch operand']
  #allocation5 [shape = 'f32[16,1]{1,0:T(8,128)}', space=vmem, size = 0x2000, scoped, tag = 'scratch operand']
  %s0 = inlined_call_operand.hbm [shape: f32[2,16,256], index: 0, kind: input, shape index: {}]
  %s1 = inlined_call_operand.vmem [shape: f32[16,3], index: 1, kind: input, shape index: {}]
  %s2 = inlined_call_operand.vmem [shape: f32[5,16], index: 2, kind: input, shape index: {}]
  %s3 = inlined_call_operand.vmem [shape: f32[2,5,256], index: 3, kind: output, shape index: {}]
  %s4 = sld [smem:[#allocation0]]
  $region65: #{tpu_custom_call.1} parent=0
    _
  %s6 = ssub.s32 1, %s4
  %s7 = scalar_select 0, %s6, %s4
  $region1: #{tpu_custom_call.1} parent=0
    #allocation6 [shape = 'u8[32768]{0}', space=vmem, size = 0x8000, scoped, tag = 'input window, operand 0']
    #allocation7 [shape = 's32[2]{0}', space=sflag, size = 0x8, scoped, tag = 'scoped memory for tpu_custom_call.1']
    %8 = vsyncpa [#allocation7], 0
    %s9 = scalar_lea.sflag [#allocation7], 1
    %10 = vsyncpa %s9, 0
    loop: start=0, step=1, limit=6
    $region2: #{tpu_custom_call.1} parent=1 // loop_pre_header
      _
    $region3: #{tpu_custom_call.1} parent=1 // loop_header
      %s12 = sphi 0, %s16
      %p13 = scmp.ge.s32.totalorder %s12, 6
      %s19 = sphi 0, %s38
      %s20 = sphi 0, %s34
      %s21 = sphi 0, %s30
      %s22 = sphi 0, %s19
      %s23 = sphi 0, %s20
      %s24 = sphi 0, %s21
      %s25 = sphi 0, %s22
      %s26 = sphi 0, %s23
      %s27 = sphi 0, %s24
      %s43 = sphi 0, %s45
      %s46 = sphi 0, %s43
      %s47 = sphi 0, %s46
      %s63 = sphi 0, %s47
      %s67 = sphi 0, %s67
      %s69 = sphi 0, %s67
      %s70 = sphi 0, %s69
      %s84 = sphi 0, %s70
      %s88 = sphi 0, %s88
      %s90 = sphi 0, %s88
      %s91 = sphi 0, %s90
      %s105 = sphi 0, %s91
      %s115 = sphi 0, %s117
      %s118 = sphi 0, %s115
      %s119 = sphi 0, %s118
      %s135 = sphi 0, %s119
    $region4: #{tpu_custom_call.1} parent=1 // loop_header_branch
      %15 = sbr.rel (%p13) target = $region8
    $region5: #{tpu_custom_call.1} parent=1 // loop_body
      %s17 = ssub.s32 %s12, 1
      %s18 = ssub.s32 %s12, 2
      %s28 = sadd.s32 1, %s21
      %p29 = scmp.ge.s32.totalorder %s28, 1
      %s30 = scalar_select %p29, 0, %s28
      %s31 = sadd.s32 1, %s20
      %s32 = scalar_select %p29, %s31, %s20
      %p33 = scmp.ge.s32.totalorder %s32, 2
      %s34 = scalar_select %p33, 0, %s32
      %s35 = sadd.s32 1, %s19
      %s36 = scalar_select %p33, %s35, %s19
      %p37 = scmp.ge.s32.totalorder %s36, 2
      %s38 = scalar_select %p37, 0, %s36
      %s39 = ssub.s32 %s19, %s38
      %s40 = ssub.s32 %s21, %s30
      %s41 = sor.u32 %s39, %s40
      %p42 = scmp.eq.s32.totalorder %s41, 0
      %s44 = sadd.s32 %s43, 1
      %s45 = scalar_select %p42, %s43, %s44
      %p48 = pneg %p42
      %p49 = scmp.eq.s32.totalorder %s12, 3
      %p50 = por %p48, %p49
      %p51 = scmp.ne.s32.totalorder %s43, %s46
      %p52 = scmp.eq.s32.totalorder %s12, 0
      %p53 = por %p51, %p52
      %p54 = scmp.ne.s32.totalorder %s43, %s46
      %p55 = scmp.eq.s32.totalorder %s17, 3
      %p56 = por %p54, %p55
      %p57 = scmp.ne.s32.totalorder %s46, %s47
      %p58 = scmp.eq.s32.totalorder %s17, 0
      %p59 = por %p57, %p58
      %p60 = scmp.ne.s32.totalorder %s46, %s47
      %p61 = scmp.eq.s32.totalorder %s18, 3
      %p62 = por %p60, %p61
      %p64 = scmp.ne.s32.totalorder %s47, %s63
      %p65 = scmp.eq.s32.totalorder %s18, 0
      %p66 = por %p64, %p65
      %s68 = sadd.s32 %s67, 1
      %p71 = scmp.eq.s32.totalorder %s12, 3
      %p72 = scmp.ne.s32.totalorder %s67, %s69
      %p73 = scmp.eq.s32.totalorder %s12, 0
      %p74 = por %p72, %p73
      %p75 = scmp.ne.s32.totalorder %s67, %s69
      %p76 = scmp.eq.s32.totalorder %s17, 3
      %p77 = por %p75, %p76
      %p78 = scmp.ne.s32.totalorder %s69, %s70
      %p79 = scmp.eq.s32.totalorder %s17, 0
      %p80 = por %p78, %p79
      %p81 = scmp.ne.s32.totalorder %s69, %s70
      %p82 = scmp.eq.s32.totalorder %s18, 3
      %p83 = por %p81, %p82
      %p85 = scmp.ne.s32.totalorder %s70, %s84
      %p86 = scmp.eq.s32.totalorder %s18, 0
      %p87 = por %p85, %p86
      %s89 = sadd.s32 %s88, 1
      %p92 = scmp.eq.s32.totalorder %s12, 3
      %p93 = scmp.ne.s32.totalorder %s88, %s90
      %p94 = scmp.eq.s32.totalorder %s12, 0
      %p95 = por %p93, %p94
      %p96 = scmp.ne.s32.totalorder %s88, %s90
      %p97 = scmp.eq.s32.totalorder %s17, 3
      %p98 = por %p96, %p97
      %p99 = scmp.ne.s32.totalorder %s90, %s91
      %p100 = scmp.eq.s32.totalorder %s17, 0
      %p101 = por %p99, %p100
      %p102 = scmp.ne.s32.totalorder %s90, %s91
      %p103 = scmp.eq.s32.totalorder %s18, 3
      %p104 = por %p102, %p103
      %p106 = scmp.ne.s32.totalorder %s91, %s105
      %p107 = scmp.eq.s32.totalorder %s18, 0
      %p108 = por %p106, %p107
      %s109 = smul.u32 %s21, %s20
      %s110 = smul.u32 %s30, %s34
      %s111 = ssub.s32 %s19, %s38
      %s112 = ssub.s32 %s109, %s110
      %s113 = sor.u32 %s111, %s112
      %p114 = scmp.eq.s32.totalorder %s113, 0
      %s116 = sadd.s32 %s115, 1
      %s117 = scalar_select %p114, %s115, %s116
      %p120 = pneg %p114
      %p121 = scmp.eq.s32.totalorder %s12, 3
      %p122 = por %p120, %p121
      %p123 = scmp.ne.s32.totalorder %s115, %s118
      %p124 = scmp.eq.s32.totalorder %s12, 0
      %p125 = por %p123, %p124
      %p126 = scmp.ne.s32.totalorder %s115, %s118
      %p127 = scmp.eq.s32.totalorder %s17, 3
      %p128 = por %p126, %p127
      %p129 = scmp.ne.s32.totalorder %s118, %s119
      %p130 = scmp.eq.s32.totalorder %s17, 0
      %p131 = por %p129, %p130
      %p132 = scmp.ne.s32.totalorder %s118, %s119
      %p133 = scmp.eq.s32.totalorder %s18, 3
      %p134 = por %p132, %p133
      %p136 = scmp.ne.s32.totalorder %s119, %s135
      %p137 = scmp.eq.s32.totalorder %s18, 0
      %p138 = por %p136, %p137
      %p139 = scmp.le.s32.totalorder 1, %s12
      %p140 = scmp.lt.s32.totalorder %s12, 5
      %p141 = pnand %p139, %p140
      %p142 = pneg %p141
      // Predicated region
      $region9: #{tpu_custom_call.1} parent=5 // pred_check
        _
      $region10: #{tpu_custom_call.1} parent=5 // pred_check_branch
        %144 = sbr.rel (%p141) target = $region12
      $region11: #{tpu_custom_call.1} parent=5 // pred_region
        %s145 = ssub.s32 %s12, 1
        // Predicated region
        $region13: #{tpu_custom_call.1} parent=11 // pred_check
          %p146 = pneg %p80
        $region14: #{tpu_custom_call.1} parent=11 // pred_check_branch
          %148 = sbr.rel (%p146) target = $region16
        $region15: #{tpu_custom_call.1} parent=11 // pred_region
          _
        $region16: #{tpu_custom_call.1} parent=11 // pred_fallthru
          _
        // Predicated region
        $region17: #{tpu_custom_call.1} parent=11 // pred_check
          %p149 = pneg %p101
        $region18: #{tpu_custom_call.1} parent=11 // pred_check_branch
          %151 = sbr.rel (%p149) target = $region20
        $region19: #{tpu_custom_call.1} parent=11 // pred_region
          _
        $region20: #{tpu_custom_call.1} parent=11 // pred_fallthru
          _
      $region12: #{tpu_custom_call.1} parent=5 // pred_fallthru
        _
      %p152 = scmp.lt.s32.totalorder %s12, 4
      // Predicated region
      $region21: #{tpu_custom_call.1} parent=5 // pred_check
        %p153 = pneg %p152
      $region22: #{tpu_custom_call.1} parent=5 // pred_check_branch
        %155 = sbr.rel (%p153) target = $region24
      $region23: #{tpu_custom_call.1} parent=5 // pred_region
        // Predicated region
        $region25: #{tpu_custom_call.1} parent=23 // pred_check
          %p156 = pneg %p53
        $region26: #{tpu_custom_call.1} parent=23 // pred_check_branch
          %158 = sbr.rel (%p156) target = $region28
        $region27: #{tpu_custom_call.1} parent=23 // pred_region
          %s159 = sand.u32 %s43, 1
          %s160 = scalar_lea.sflag [#allocation7], %s159
          %s161 = sand.u32 %s43, 1
          %s162 = smul.addr %s161, 32
          %s163 = scalar_lea.vmem [#allocation6], %s162
          %s164 = smul.u32 2, %s21
          %s166 = ssub.s32 512, 512
          %167 = vsyncadd %s160, %s166
          %s168 = smul.addr %s19, 4
          %s169 = sadd.s32 %s164, %s168
          %s170 = smul.addr %s169, 128
          %s171 = scalar_lea.hbm %s0, %s170
          %s172 = sshll.u32 %s163, 4
          %s173 = int_to_ptr.vmem [resolvable:$true] %s172
          %178 = dma.hbm_to_vmem [thread:$0]  %s171, 512, %s173, %s160, 256, 256, 16
        $region28: #{tpu_custom_call.1} parent=23 // pred_fallthru
          _
      $region24: #{tpu_custom_call.1} parent=5 // pred_fallthru
        _
      %p179 = scmp.le.s32.totalorder 1, %s12
      %p180 = scmp.lt.s32.totalorder %s12, 5
      %p181 = pnand %p179, %p180
      %p182 = pneg %p181
      // Predicated region
      $region29: #{tpu_custom_call.1} parent=5 // pred_check
        _
      $region30: #{tpu_custom_call.1} parent=5 // pred_check_branch
        %184 = sbr.rel (%p181) target = $region32
      $region31: #{tpu_custom_call.1} parent=5 // pred_region
        %s185 = ssub.s32 %s12, 1
        %s186 = sand.u32 %s46, 1
        %s187 = scalar_lea.sflag [#allocation7], %s186
        %s188 = sand.u32 %s46, 1
        %s189 = smul.addr %s188, 32
        %s190 = scalar_lea.vmem [#allocation6], %s189
        // Predicated region
        $region33: #{tpu_custom_call.1} parent=31 // pred_check
          %p191 = pneg %p59
        $region34: #{tpu_custom_call.1} parent=31 // pred_check_branch
          %193 = sbr.rel (%p191) target = $region36
        $region35: #{tpu_custom_call.1} parent=31 // pred_region
          %194 = dma.done %s187, 512
        $region36: #{tpu_custom_call.1} parent=31 // pred_fallthru
          _
        %s195 = sand.u32 %s46, 1
        %s196 = scalar_lea.sflag [#allocation7], %s195
        %s197 = sand.u32 %s46, 1
        %s198 = smul.addr %s197, 32
        %s199 = scalar_lea.vmem [#allocation6], %s198
        %p200 = pneg %p59
        %p201 = pneg %p56
        %p202 = pneg %p80
        %p203 = pneg %p77
        %p204 = pneg %p101
        %p205 = pneg %p98
        %p206 = pneg %p131
        %p207 = pneg %p128
        %s208 = smul.u32 %s24, %s23
        %s209 = smul.u32 2, %s208
        %p210 = scmp.lt.s32.totalorder %s22, 1
        %s211 = scalar_select %p210, %s22, 1
        %p212 = scmp.lt.s32.totalorder %s209, 1
        %s213 = scalar_select %p212, %s209, 1
        %s214 = smul.addr %s211, 2
        %s215 = sadd.s32 %s213, %s214
        %s216 = smul.addr %s215, 8
        %s217 = scalar_lea.vmem %s3, %s216
        %s218 = smul.u32 2, %s24
        %s219 = smul.u32 %s24, %s23
        %s220 = smul.u32 2, %s219
        %p221 = scmp.lt.s32.totalorder %s22, 1
        %s222 = scalar_select %p221, %s22, 1
        %p223 = scmp.lt.s32.totalorder %s220, 1
        %s224 = scalar_select %p223, %s220, 1
        %s225 = smul.addr %s222, 2
        %s226 = sadd.s32 %s224, %s225
        %s227 = smul.addr %s226, 8
        %s228 = scalar_lea.vmem %s3, %s227
        %s229 = smul.u32 %s24, %s23
        %s230 = smul.u32 2, %s229
        %p231 = scmp.eq.s32.totalorder %s23, 0
        // Predicated region
        $region37: #{tpu_custom_call.1} parent=31 // pred_check
          %p232 = pneg %p231
        $region38: #{tpu_custom_call.1} parent=31 // pred_check_branch
          %234 = sbr.rel (%p232) target = $region40
        $region39: #{tpu_custom_call.1} parent=31 // pred_region
          %v235 = vld [vmem:[%s190] sm:$0xff]
          %v236 = vld [vmem:[%s190 + $0x8] sm:$0xff]
          %v237 = vld [vmem:[%s190 + $0x10] sm:$0xff]
          %v238 = vld [vmem:[%s190 + $0x18] sm:$0xff]
          %p239 = scmp.eq.s32.totalorder %s24, 0
          // Predicated region
          $region41: #{tpu_custom_call.1} parent=39 // pred_check
            %p240 = pneg %p239
          $region42: #{tpu_custom_call.1} parent=39 // pred_check_branch
            %242 = sbr.rel (%p240) target = $region44
          $region43: #{tpu_custom_call.1} parent=39 // pred_region
            %vm243 = vcmask 7168
            %244 = vst.msk [vmem:[#allocation2] sm:$0xff] %vm243, 0.0
            %245 = vst.msk [vmem:[#allocation2 + $0x8] sm:$0xff] %vm243, 0.0
            %246 = vst.msk [vmem:[#allocation3] sm:$0xff] %vm243, 0.0
            %247 = vst.msk [vmem:[#allocation3 + $0x8] sm:$0xff] %vm243, 0.0
          $region44: #{tpu_custom_call.1} parent=39 // pred_fallthru
            _
          %v248 = vld [vmem:[#allocation2] sm:$0xff]
          %v249 = vld [vmem:[#allocation2 + $0x8] sm:$0xff]
          %v250 = vadd.f32 %v235, %v236
          %251 = vadd.xlane.f32.xlu0 %v250
          %v252 = vpop.xlane.xlu0 %251
          %v253 = vadd.f32 %v237, %v238
          %254 = vadd.xlane.f32.xlu0 %v253
          %v255 = vpop.xlane.xlu0 %254
          %v256 = vadd.f32 %v248, %v252
          %v257 = vadd.f32 %v249, %v255
          %vm258 = vcmask 7168
          %259 = vst.msk [vmem:[#allocation2] sm:$0xff] %vm258, %v256
          %260 = vst.msk [vmem:[#allocation2 + $0x8] sm:$0xff] %vm258, %v257
          %v261 = vld [vmem:[#allocation3] sm:$0xff]
          %v262 = vld [vmem:[#allocation3 + $0x8] sm:$0xff]
          %v263 = vmul.f32 %v235, %v235
          %v264 = vmul.f32 %v236, %v236
          %v265 = vmul.f32 %v237, %v237
          %v266 = vmul.f32 %v238, %v238
          %v267 = vadd.f32 %v263, %v264
          %268 = vadd.xlane.f32.xlu0 %v267
          %v269 = vpop.xlane.xlu0 %268
          %v270 = vadd.f32 %v265, %v266
          %271 = vadd.xlane.f32.xlu0 %v270
          %v272 = vpop.xlane.xlu0 %271
          %v273 = vadd.f32 %v261, %v269
          %v274 = vadd.f32 %v262, %v272
          %275 = vst.msk [vmem:[#allocation3] sm:$0xff] %vm258, %v273
          %276 = vst.msk [vmem:[#allocation3 + $0x8] sm:$0xff] %vm258, %v274
        $region40: #{tpu_custom_call.1} parent=31 // pred_fallthru
          _
        %p277 = scmp.eq.s32.totalorder %s23, 1
        // Predicated region
        $region45: #{tpu_custom_call.1} parent=31 // pred_check
          %p278 = pneg %p277
        $region46: #{tpu_custom_call.1} parent=31 // pred_check_branch
          %280 = sbr.rel (%p278) target = $region48
        $region47: #{tpu_custom_call.1} parent=31 // pred_region
          %p281 = scmp.eq.s32.totalorder %s24, 0
          // Predicated region
          $region49: #{tpu_custom_call.1} parent=47 // pred_check
            %p282 = pneg %p281
          $region50: #{tpu_custom_call.1} parent=47 // pred_check_branch
            %284 = sbr.rel (%p282) target = $region52
          $region51: #{tpu_custom_call.1} parent=47 // pred_region
            %v285 = vld [vmem:[#allocation2] sm:$0xff]
            %v286 = vld [vmem:[#allocation2 + $0x8] sm:$0xff]
            %v287 = vmul.f32 %v285, 0.00390625
            %v288 = vmul.f32 %v286, 0.00390625
            %v289 = vld [vmem:[#allocation3] sm:$0xff]
            %v290 = vld [vmem:[#allocation3 + $0x8] sm:$0xff]
            %v291 = vmul.f32 %v289, 0.00390625
            %v292 = vmul.f32 %v290, 0.00390625
            %v293 = vmul.f32 %v287, %v287
            %v294 = vmul.f32 %v288, %v288
            %v295 = vsub.f32 %v291, %v293
            %v296 = vsub.f32 %v292, %v294
            %v297 = vmax.f32 %v295, 0.0
            %v298 = vmax.f32 %v296, 0.0
            %v299 = vld [vmem:[%s1] sm:$0xff]
            %v300 = vld [vmem:[%s1 + $0x8] sm:$0xff]
            %v301 = vmul.f32 %v299, %v297
            %v302 = vmul.f32 %v300, %v298
            %v303 = vadd.f32 %v301, 1e-05
            %v304 = vadd.f32 %v302, 1e-05
            %v305 = vrsqrt.pop %v303
            %v306 = vrsqrt.pop %v304
            %309 = vrot.lane.b32.xlu0 %v305, 1
            %v310 = vpop.permute.xlu0 %309
            %311 = vrot.lane.b32.xlu0 %v306, 1
            %v312 = vpop.permute.xlu0 %311
            %v315 = vmul.f32 %v299, %v310
            %v316 = vmul.f32 %v300, %v312
            %319 = vrot.lane.b32.xlu0 %v315, 127
            %v320 = vpop.permute.xlu0 %319
            %321 = vrot.lane.b32.xlu0 %v316, 127
            %v322 = vpop.permute.xlu0 %321
            %vm325 = vcmask 7168
            %326 = vst.msk [vmem:[#allocation4] sm:$0xff] %vm325, %v320
            %327 = vst.msk [vmem:[#allocation4 + $0x8] sm:$0xff] %vm325, %v322
            %330 = vrot.lane.b32.xlu0 %v287, 1
            %v331 = vpop.permute.xlu0 %330
            %332 = vrot.lane.b32.xlu0 %v288, 1
            %v333 = vpop.permute.xlu0 %332
            %v336 = vmul.f32 %v315, %v331
            %v337 = vmul.f32 %v316, %v333
            %340 = vrot.lane.b32.xlu0 %v336, 1
            %v341 = vpop.permute.xlu0 %340
            %342 = vrot.lane.b32.xlu0 %v337, 1
            %v343 = vpop.permute.xlu0 %342
            %v346 = vsub.f32 %v299, %v341
            %v347 = vsub.f32 %v300, %v343
            %350 = vrot.lane.b32.xlu0 %v346, 126
            %v351 = vpop.permute.xlu0 %350
            %352 = vrot.lane.b32.xlu0 %v347, 126
            %v353 = vpop.permute.xlu0 %352
            %356 = vst.msk [vmem:[#allocation5] sm:$0xff] %vm325, %v351
            %357 = vst.msk [vmem:[#allocation5 + $0x8] sm:$0xff] %vm325, %v353
          $region52: #{tpu_custom_call.1} parent=47 // pred_fallthru
            _
          %v358 = vld [vmem:[#allocation4] sm:$0xff]
          %v359 = vld [vmem:[#allocation4 + $0x8] sm:$0xff]
          %v360 = vld [vmem:[#allocation5] sm:$0xff]
          %v361 = vld [vmem:[#allocation5 + $0x8] sm:$0xff]
          %v362 = vld [vmem:[%s2] sm:$0x1f]
          %v363 = vld [vmem:[%s190] sm:$0xff]
          %v364 = vld [vmem:[%s190 + $0x8] sm:$0xff]
          %v365 = vld [vmem:[%s190 + $0x10] sm:$0xff]
          %v366 = vld [vmem:[%s190 + $0x18] sm:$0xff]
          %368 = vset.pattern.permute.xlu0 0
          %369 = vperm.xlu0 %368, %v358
          %v370 = vpop.permute.xlu0 %369
          %373 = vset.pattern.permute.xlu0 0
          %374 = vperm.xlu0 %373, %v359
          %v375 = vpop.permute.xlu0 %374
          %v377 = vmul.f32 %v370, %v363
          %v378 = vmul.f32 %v370, %v364
          %v379 = vmul.f32 %v375, %v365
          %v380 = vmul.f32 %v375, %v366
          %382 = vset.pattern.permute.xlu0 0
          %383 = vperm.xlu0 %382, %v360
          %v384 = vpop.permute.xlu0 %383
          %387 = vset.pattern.permute.xlu0 0
          %388 = vperm.xlu0 %387, %v361
          %v389 = vpop.permute.xlu0 %388
          %v391 = vadd.f32 %v377, %v384
          %v392 = vadd.f32 %v378, %v384
          %v393 = vadd.f32 %v379, %v389
          %v394 = vadd.f32 %v380, %v389
          %v395 = vmax.f32 %v391, 0.0
          %v396 = vmax.f32 %v392, 0.0
          %v397 = vmax.f32 %v393, 0.0
          %v398 = vmax.f32 %v394, 0.0
          %vm399 = vcmask 130048
          %v401 = vsel %vm399, %v362, 0
          %403 = vmatprep.subr.mxu0 %v396
          %404 = vmatpush1.msra.mxu0 %v395
          %405 = vmatprep.subr.mxu0 %v398
          %406 = vmatpush1.msra.mxu0 %v397
          %407 = vmatprep.subr.mxu0 0.0
          %408 = vmatpush1.msra.mxu0 0.0
          %409 = vmatprep.subr.mxu0 0.0
          %410 = vmatpush1.msra.mxu0 0.0
          %411 = vmatprep.subr.mxu0 0.0
          %412 = vmatpush1.msra.mxu0 0.0
          %413 = vmatprep.subr.mxu0 0.0
          %414 = vmatpush1.msra.mxu0 0.0
          %415 = vmatprep.subr.mxu0 0.0
          %416 = vmatpush1.msra.mxu0 0.0
          %417 = vmatprep.subr.mxu0 0.0
          %418 = vmatpush1.msra.mxu0 0.0
          %419 = vmatprep.subr.mxu0 0.0
          %420 = vmatpush1.msra.mxu0 0.0
          %421 = vmatprep.subr.mxu0 0.0
          %422 = vmatpush1.msra.mxu0 0.0
          %423 = vmatprep.subr.mxu0 0.0
          %424 = vmatpush1.msra.mxu0 0.0
          %425 = vmatprep.subr.mxu0 0.0
          %426 = vmatpush1.msra.mxu0 0.0
          %427 = vmatprep.subr.mxu0 0.0
          %428 = vmatpush1.msra.mxu0 0.0
          %429 = vmatprep.subr.mxu0 0.0
          %430 = vmatpush1.msra.mxu0 0.0
          %431 = vmatprep.subr.mxu0 0.0
          %432 = vmatpush1.msra.mxu0 0.0
          %433 = vmatprep.subr.mxu0 0.0
          %434 = vmatpush1.msra.mxu0 0.0
          %435 = vmatprep.subr.mxu0 0.0
          %436 = vmatpush1.msra.mxu0 0.0
          %437 = vmatprep.subr.mxu0 0.0
          %438 = vmatpush1.msra.mxu0 0.0
          %439 = vmatprep.subr.mxu0 0.0
          %440 = vmatpush1.msra.mxu0 0.0
          %441 = vmatprep.subr.mxu0 0.0
          %442 = vmatpush1.msra.mxu0 0.0
          %443 = vmatprep.subr.mxu0 0.0
          %444 = vmatpush1.msra.mxu0 0.0
          %445 = vmatprep.subr.mxu0 0.0
          %446 = vmatpush1.msra.mxu0 0.0
          %447 = vmatprep.subr.mxu0 0.0
          %448 = vmatpush1.msra.mxu0 0.0
          %449 = vmatprep.subr.mxu0 0.0
          %450 = vmatpush1.msra.mxu0 0.0
          %451 = vmatprep.subr.mxu0 0.0
          %452 = vmatpush1.msra.mxu0 0.0
          %453 = vmatprep.subr.mxu0 0.0
          %454 = vmatpush1.msra.mxu0 0.0
          %455 = vmatprep.subr.mxu0 0.0
          %456 = vmatpush1.msra.mxu0 0.0
          %457 = vmatprep.subr.mxu0 0.0
          %458 = vmatpush1.msra.mxu0 0.0
          %459 = vmatprep.subr.mxu0 0.0
          %460 = vmatpush1.msra.mxu0 0.0
          %461 = vmatprep.subr.mxu0 0.0
          %462 = vmatpush1.msra.mxu0 0.0
          %463 = vmatprep.subr.mxu0 0.0
          %464 = vmatpush1.msra.mxu0 0.0
          %465 = vmatprep.subr.mxu0 0.0
          %466 = vmatpush1.msra.mxu0 0.0
          %467 = vmatprep.mubr.f32.mxu0 0.0
          %468 = vmatmul.mubr.f32.gmra.mrb[0].mxu0 %v401
          %v469 = vpop.f32.mrb[0].mxu0
          %v470 = vadd.f32 0.0, %v469
          %v471 = vpop.f32.mrb[0].mxu0
          %v472 = vadd.f32 0.0, %v471
          %473 = vdwg.mxu0
          %474 = vst [vmem:[%s228] sm:$0x1f] %v470
          %475 = vst [vmem:[%s228 + $0x8] sm:$0x1f] %v472
        $region48: #{tpu_custom_call.1} parent=31 // pred_fallthru
          _
        %s476 = smul.u32 %s24, %s23
        %s477 = smul.u32 2, %s476
        %p478 = scmp.lt.s32.totalorder %s22, 1
        %s479 = scalar_select %p478, %s22, 1
        %p480 = scmp.lt.s32.totalorder %s477, 1
        %s481 = scalar_select %p480, %s477, 1
        %s482 = smul.addr %s479, 2
        %s483 = sadd.s32 %s481, %s482
        %s484 = smul.addr %s483, 8
        %s485 = scalar_lea.vmem %s3, %s484
        // Predicated region
        $region53: #{tpu_custom_call.1} parent=31 // pred_check
          %p486 = pneg %p128
        $region54: #{tpu_custom_call.1} parent=31 // pred_check_branch
          %488 = sbr.rel (%p486) target = $region56
        $region55: #{tpu_custom_call.1} parent=31 // pred_region
          %s489 = smul.u32 %s24, %s23
          %s490 = smul.u32 2, %s489
        $region56: #{tpu_custom_call.1} parent=31 // pred_fallthru
          _
      $region32: #{tpu_custom_call.1} parent=5 // pred_fallthru
        _
      %p491 = scmp.le.s32.totalorder 2, %s12
      // Predicated region
      $region57: #{tpu_custom_call.1} parent=5 // pred_check
        %p492 = pneg %p491
      $region58: #{tpu_custom_call.1} parent=5 // pred_check_branch
        %494 = sbr.rel (%p492) target = $region60
      $region59: #{tpu_custom_call.1} parent=5 // pred_region
        %s495 = ssub.s32 %s12, 2
        // Predicated region
        $region61: #{tpu_custom_call.1} parent=59 // pred_check
          %p496 = pneg %p134
        $region62: #{tpu_custom_call.1} parent=59 // pred_check_branch
          %498 = sbr.rel (%p496) target = $region64
        $region63: #{tpu_custom_call.1} parent=59 // pred_region
          %s499 = smul.u32 %s27, %s26
          %s500 = smul.u32 2, %s499
          %p501 = scmp.lt.s32.totalorder %s25, 1
          %s502 = scalar_select %p501, %s25, 1
          %p503 = scmp.lt.s32.totalorder %s500, 1
          %s504 = scalar_select %p503, %s500, 1
          %s505 = smul.addr %s502, 2
          %s506 = sadd.s32 %s504, %s505
          %s507 = smul.addr %s506, 8
          %s508 = scalar_lea.vmem %s3, %s507
        $region64: #{tpu_custom_call.1} parent=59 // pred_fallthru
          _
      $region60: #{tpu_custom_call.1} parent=5 // pred_fallthru
        _
    $region6: #{tpu_custom_call.1} parent=1 // loop_footer
      %s16 = sadd.s32 1, %s12
    $region7: #{tpu_custom_call.1} parent=1 // loop_footer_branch
      %11 = sbr.rel target = $region3
    $region8: #{tpu_custom_call.1} parent=1 // loop_exit
      _
    %509 = vsyncpa [#allocation7], 1
    %s510 = scalar_lea.sflag [#allocation7], 1
    %511 = vsyncpa %s510, 1

</llo_original>
